<compile_context>
chip_gen: v6e
topology: v6e:2x2x1
jax: 0.10.0
libtpu: 0.0.40
codegen_flags: <defaults>
</compile_context>

<pallas_src>
import jax
import jax.numpy as jnp
from jax.experimental import pallas as pl
from jax.experimental.pallas import tpu as pltpu

EPS = 1e-6
_MAX_TILE_ELEMS = 2048 * 512      # <= 4 MiB per f32 input block
_SMALL_N = 64 * 1024              # below this the fused XLA reduction wins
_VMEM_LIMIT = 32 * 1024 * 1024    # explicit: v5e default scoped limit is only 16 MiB


def _round_up(a, m):
    return -(-a // m) * m


def _sdsc_sums_pure_jax(x, y):
    x = x.astype(jnp.float32)
    y = y.astype(jnp.float32)
    a = jnp.sum(jnp.abs(x) + jnp.abs(y))   # union
    b = jnp.sum(jnp.abs(x - y))            # union - 2*intersection
    return a, b


def _make_kernel(rows, w, tr, steps, s_total, needs_mask, dup_possible):
    """Streaming SDSC partial-sum kernel over a (rows, w) view.

    grid = (p_parts, steps); chunk p owns row-blocks [p*steps, (p+1)*steps).
    Accumulators are (8, w): each step folds its (tr, w) tile into 8 sublanes
    with pure vreg adds; the single cross-lane reduction happens once per chunk
    in the finalize step.
    """

    def kernel(x_ref, y_ref, a_out_ref, b_out_ref, acc_a, acc_b):
        p = pl.program_id(0)
        s = pl.program_id(1)

        @pl.when(s == 0)
        def _init():
            acc_a[...] = jnp.zeros_like(acc_a)
            acc_b[...] = jnp.zeros_like(acc_b)

        x = x_ref[...].astype(jnp.float32)
        y = y_ref[...].astype(jnp.float32)
        u = jnp.abs(x) + jnp.abs(y)     # per-element union term
        d = jnp.abs(x - y)              # per-element (union - 2*intersection) term

        lin = p * steps + s
        if dup_possible:
            lin_c = jnp.minimum(lin, s_total - 1)
            real = lin < s_total        # False only for the single replayed block
        else:
            lin_c = lin
            real = None                 # statically always a real block

        def accumulate(apply_row_mask):
            uu, dd = u, d
            if apply_row_mask:
                gidx = lin_c * tr + jax.lax.broadcasted_iota(jnp.int32, (tr, w), 0)
                valid = gidx < rows
                uu = jnp.where(valid, uu, 0.0)
                dd = jnp.where(valid, dd, 0.0)
            # Sublane-group partial reduce: pure VALU vreg adds, no XLU, the
            # reshape stays on (8, 128) tile boundaries.
            acc_a[...] += uu.reshape(tr // 8, 8, w).sum(axis=0)
            acc_b[...] += dd.reshape(tr // 8, 8, w).sum(axis=0)

        if needs_mask:
            partial = lin_c == (s_total - 1)
            not_partial = jnp.logical_not(partial)
            if real is None:
                full_cond, part_cond = not_partial, partial
            else:
                full_cond = jnp.logical_and(real, not_partial)
                part_cond = jnp.logical_and(real, partial)

            @pl.when(full_cond)
            def _full():
                accumulate(False)

            @pl.when(part_cond)
            def _part():
                accumulate(True)
        elif dup_possible:
            @pl.when(real)
            def _real():
                accumulate(False)
        else:
            accumulate(False)

        # Single cross-lane reduction per chunk, only at the last step.
        @pl.when(s == steps - 1)
        def _finalize():
            a_out_ref[...] = jnp.broadcast_to(jnp.sum(acc_a[...]), a_out_ref.shape)
            b_out_ref[...] = jnp.broadcast_to(jnp.sum(acc_b[...]), b_out_ref.shape)

    return kernel


def signal_dice_loss(inputs, targets, eps=EPS, *,
                     _force_kernel=False, _max_tile_elems=_MAX_TILE_ELEMS):
    """1 - SDSC(inputs, targets). inputs/targets: same shape. Returns f32 scalar."""
    assert inputs.shape == targets.shape, (inputs.shape, targets.shape)
    x = inputs.reshape(-1)
    y = targets.reshape(-1)
    n = x.shape[0]
    eps = jnp.float32(eps)

    if n == 0:
        return jnp.float32(1.0)

    # Lane width: largest of {512, 256, 128} dividing n, so the 2-D view is a
    # free row-major reshape (no pad / concat copy of the inputs).
    w = next((cand for cand in (512, 256, 128) if n % cand == 0), None)

    # Fast path: tiny inputs (pallas_call fixed cost dominates) or ragged n
    # where a copy-free lane-dense view is impossible; the fused XLA reduction
    # is a single HBM pass anyway.
    if w is None or (n < _SMALL_N and not _force_kernel):
        a_tot, b_tot = _sdsc_sums_pure_jax(x, y)
        return (1.0 - (a_tot - b_tot) / (a_tot + eps)).astype(jnp.float32)

    rows = n // w
    x2 = x.reshape(rows, w)   # free reshapes; dtype passes through (bf16 stays bf16)
    y2 = y.reshape(rows, w)

    # Sublane-packing multiple for the narrowest input dtype.
    itemsize = min(jnp.dtype(x2.dtype).itemsize, jnp.dtype(y2.dtype).itemsize)
    sub = {4: 8, 2: 16, 1: 32}.get(itemsize, 8)

    tr_cap = max(sub, (_max_tile_elems // w) // sub * sub)
    tr = min(tr_cap, _round_up(rows, sub))
    s_total = int(pl.cdiv(rows, tr))
    needs_mask = (rows % tr) != 0

    # Megacore-friendly split: 2 chunks whenever there are >= 2 row blocks.
    # With the clamped index_map + pl.when skip this costs at most one
    # redundant tile DMA on 1-TC chips (v5e/v6e), so no hardware query needed.
    if s_total >= 2:
        p_parts = 2
        steps = int(pl.cdiv(s_total, 2))
    else:
        p_parts, steps = 1, 1
    dup_possible = p_parts * steps > s_total

    if dup_possible:
        in_map = lambda p, s: (jnp.minimum(p * steps + s, s_total - 1), 0)
    else:
        in_map = lambda p, s: (p * steps + s, 0)
    out_map = lambda p, s: (p, 0, 0)

    kernel = _make_kernel(rows, w, tr, steps, s_total, needs_mask, dup_possible)

    a_out, b_out = pl.pallas_call(
        kernel,
        out_shape=(
            jax.ShapeDtypeStruct((p_parts, 8, 128), jnp.float32),
            jax.ShapeDtypeStruct((p_parts, 8, 128), jnp.float32),
        ),
        grid_spec=pltpu.PrefetchScalarGridSpec(
            num_scalar_prefetch=0,
            grid=(p_parts, steps),
            in_specs=[
                pl.BlockSpec((tr, w), in_map),
                pl.BlockSpec((tr, w), in_map),
            ],
            out_specs=[
                pl.BlockSpec((1, 8, 128), out_map),
                pl.BlockSpec((1, 8, 128), out_map),
            ],
            scratch_shapes=[
                pltpu.VMEM((8, w), jnp.float32),   # union partials
                pltpu.VMEM((8, w), jnp.float32),   # |x - y| partials
            ],
        ),
        compiler_params=pltpu.CompilerParams(
            dimension_semantics=("parallel", "arbitrary"),
            vmem_limit_bytes=_VMEM_LIMIT,
        ),
    )(x2, y2)

    a_tot = jnp.sum(a_out[:, 0, 0])
    b_tot = jnp.sum(b_out[:, 0, 0])
    loss = 1.0 - (a_tot - b_tot) / (a_tot + eps)
    return loss.astype(jnp.float32)


def _signal_dice_loss_ref(inputs, targets, eps=EPS):
    """Literal sign-based reference (matches the PyTorch module)."""
    x = inputs.astype(jnp.float32).reshape(-1)
    y = targets.astype(jnp.float32).reshape(-1)
    same_sign = (jnp.sign(x) == jnp.sign(y)).astype(jnp.float32)
    inter = jnp.sum(jnp.minimum(jnp.abs(x), jnp.abs(y)) * same_sign)
    union = jnp.sum(jnp.abs(x)) + jnp.sum(jnp.abs(y))
    return 1.0 - 2.0 * inter / (union + eps)


if __name__ == "__main__":
    key = jax.random.PRNGKey(0)

    # (shape, dtype, force_kernel, max_tile_elems_override)
    cases = [
        # tiny SimMTM-like shape -> pure-JAX fast path
        ((2, 8, 4), jnp.float32, False, None),
        # forced kernel with tiny tiles: w=128, multi-step grid, megacore split,
        # clamped duplicate step skipped via pl.when, ragged last block masked
        ((4, 96, 7), jnp.float32, True, 1024),
        # bf16 passthrough + partial (masked) block, single step
        ((2, 96, 64), jnp.bfloat16, True, None),
        # large enough to take the kernel path naturally (no masking needed)
        ((2, 336, 128), jnp.float32, False, None),
    ]

    for shape, dtype, force, mte in cases:
        k1, k2, key = jax.random.split(key, 3)
        a = jax.random.normal(k1, shape, dtype=jnp.float32).astype(dtype)
        b = jax.random.normal(k2, shape, dtype=jnp.float32).astype(dtype)

        kwargs = {}
        if force:
            kwargs["_force_kernel"] = True
        if mte is not None:
            kwargs["_max_tile_elems"] = mte

        loss = signal_dice_loss(a, b, **kwargs)
        jax.block_until_ready(loss)

        ref = _signal_dice_loss_ref(a, b)
        assert jnp.abs(loss - ref) < 1e-4, (shape, float(loss), float(ref))

    print("KERNEL_OK")
</pallas_src>

<mosaic_0001>
module attributes {stable_mosaic.version = 11 : i64} {
  func.func @kernel(%arg0: i32, %arg1: i32, %arg2: memref<8x128xf32, #tpu.memory_space<vmem>>, %arg3: memref<8x128xf32, #tpu.memory_space<vmem>>, %arg4: memref<1x8x128xf32, #tpu.memory_space<vmem>>, %arg5: memref<1x8x128xf32, #tpu.memory_space<vmem>>, %arg6: memref<8x128xf32, #tpu.memory_space<vmem>>, %arg7: memref<8x128xf32, #tpu.memory_space<vmem>>) attributes {dimension_semantics = [#tpu.dimension_semantics<parallel>, #tpu.dimension_semantics<arbitrary>], iteration_bounds = array<i64: 2, 2>, scalar_prefetch = 0 : i64, scratch_operands = 2 : i64, tpu.core_type = #tpu.core_type<tc>, window_params = [{transform_indices = @transform_0, window_bounds = array<i64: 8, 128>}, {transform_indices = @transform_1, window_bounds = array<i64: 8, 128>}, {transform_indices = @transform_2, window_bounds = array<i64: 1, 8, 128>}, {transform_indices = @transform_3, window_bounds = array<i64: 1, 8, 128>}]} {
    %c0_i32 = arith.constant 0 : i32
    %0 = arith.cmpi eq, %arg1, %c0_i32 : i32
    %1 = arith.extui %0 : i1 to i32
    %c0_i32_0 = arith.constant 0 : i32
    %2 = arith.cmpi ne, %1, %c0_i32_0 : i32
    scf.if %2 {
      %cst = arith.constant 0.000000e+00 : f32
      %25 = vector.broadcast %cst : f32 to vector<8x128xf32>
      %c0_9 = arith.constant 0 : index
      %c0_10 = arith.constant 0 : index
      %26 = vector.load %arg6[%c0_9, %c0_10] : memref<8x128xf32, #tpu.memory_space<vmem>>, vector<8x128xf32>
      tpu.vector_store %arg6[%c0_9, %c0_10], %25 {strides = array<i32>} : memref<8x128xf32, #tpu.memory_space<vmem>>, vector<8x128xf32>,
      %cst_11 = arith.constant 0.000000e+00 : f32
      %27 = vector.broadcast %cst_11 : f32 to vector<8x128xf32>
      %c0_12 = arith.constant 0 : index
      %c0_13 = arith.constant 0 : index
      %28 = vector.load %arg7[%c0_12, %c0_13] : memref<8x128xf32, #tpu.memory_space<vmem>>, vector<8x128xf32>
      tpu.vector_store %arg7[%c0_12, %c0_13], %27 {strides = array<i32>} : memref<8x128xf32, #tpu.memory_space<vmem>>, vector<8x128xf32>,
    } else {
    }
    %c0 = arith.constant 0 : index
    %c0_1 = arith.constant 0 : index
    %3 = vector.load %arg2[%c0, %c0_1] : memref<8x128xf32, #tpu.memory_space<vmem>>, vector<8x128xf32>
    %c0_2 = arith.constant 0 : index
    %c0_3 = arith.constant 0 : index
    %4 = vector.load %arg3[%c0_2, %c0_3] : memref<8x128xf32, #tpu.memory_space<vmem>>, vector<8x128xf32>
    %5 = math.absf %3 : vector<8x128xf32>
    %6 = math.absf %4 : vector<8x128xf32>
    %7 = arith.addf %5, %6 : vector<8x128xf32>
    %8 = arith.subf %3, %4 : vector<8x128xf32>
    %9 = math.absf %8 : vector<8x128xf32>
    %c2_i32 = arith.constant 2 : i32
    %10 = arith.muli %arg0, %c2_i32 : i32
    %11 = arith.addi %10, %arg1 : i32
    %c2_i32_4 = arith.constant 2 : i32
    %12 = arith.minsi %11, %c2_i32_4 : i32
    %c3_i32 = arith.constant 3 : i32
    %13 = arith.cmpi slt, %11, %c3_i32 : i32
    %c2_i32_5 = arith.constant 2 : i32
    %14 = arith.cmpi eq, %12, %c2_i32_5 : i32
    %true = arith.constant true
    %15 = arith.xori %14, %true : i1
    %16 = arith.andi %13, %15 : i1
    %17 = arith.andi %13, %14 : i1
    %18 = arith.extui %16 : i1 to i32
    %c0_i32_6 = arith.constant 0 : i32
    %19 = arith.cmpi ne, %18, %c0_i32_6 : i32
    scf.if %19 {
      %c0_9 = arith.constant 0 : index
      %c0_10 = arith.constant 0 : index
      %25 = vector.load %arg6[%c0_9, %c0_10] : memref<8x128xf32, #tpu.memory_space<vmem>>, vector<8x128xf32>
      %26 = vector.shape_cast %7 : vector<8x128xf32> to vector<1x8x128xf32>
      %cst = arith.constant dense<0.000000e+00> : vector<8x128xf32>
      %27 = vector.multi_reduction <add>, %26, %cst [0] : vector<1x8x128xf32> to vector<8x128xf32>
      %28 = arith.addf %25, %27 : vector<8x128xf32>
      %c0_11 = arith.constant 0 : index
      %c0_12 = arith.constant 0 : index
      %29 = vector.load %arg6[%c0_11, %c0_12] : memref<8x128xf32, #tpu.memory_space<vmem>>, vector<8x128xf32>
      tpu.vector_store %arg6[%c0_11, %c0_12], %28 {strides = array<i32>} : memref<8x128xf32, #tpu.memory_space<vmem>>, vector<8x128xf32>,
      %c0_13 = arith.constant 0 : index
      %c0_14 = arith.constant 0 : index
      %30 = vector.load %arg7[%c0_13, %c0_14] : memref<8x128xf32, #tpu.memory_space<vmem>>, vector<8x128xf32>
      %31 = vector.shape_cast %9 : vector<8x128xf32> to vector<1x8x128xf32>
      %cst_15 = arith.constant dense<0.000000e+00> : vector<8x128xf32>
      %32 = vector.multi_reduction <add>, %31, %cst_15 [0] : vector<1x8x128xf32> to vector<8x128xf32>
      %33 = arith.addf %30, %32 : vector<8x128xf32>
      %c0_16 = arith.constant 0 : index
      %c0_17 = arith.constant 0 : index
      %34 = vector.load %arg7[%c0_16, %c0_17] : memref<8x128xf32, #tpu.memory_space<vmem>>, vector<8x128xf32>
      tpu.vector_store %arg7[%c0_16, %c0_17], %33 {strides = array<i32>} : memref<8x128xf32, #tpu.memory_space<vmem>>, vector<8x128xf32>,
    } else {
    }
    %20 = arith.extui %17 : i1 to i32
    %c0_i32_7 = arith.constant 0 : i32
    %21 = arith.cmpi ne, %20, %c0_i32_7 : i32
    scf.if %21 {
      %c8_i32 = arith.constant 8 : i32
      %25 = arith.muli %12, %c8_i32 : i32
      %26 = tpu.iota {dimensions = array<i32: 0>} : vector<8x128xi32>
      %27 = vector.broadcast %25 : i32 to vector<8x128xi32>
      %28 = arith.addi %27, %26 : vector<8x128xi32>
      %c21_i32 = arith.constant 21 : i32
      %29 = vector.broadcast %c21_i32 : i32 to vector<8x128xi32>
      %30 = arith.cmpi slt, %28, %29 : vector<8x128xi32>
      %cst = arith.constant 0.000000e+00 : f32
      %31 = vector.broadcast %cst : f32 to vector<8x128xf32>
      %32 = arith.select %30, %7, %31 : vector<8x128xi1>, vector<8x128xf32>
      %cst_9 = arith.constant 0.000000e+00 : f32
      %33 = vector.broadcast %cst_9 : f32 to vector<8x128xf32>
      %34 = arith.select %30, %9, %33 : vector<8x128xi1>, vector<8x128xf32>
      %c0_10 = arith.constant 0 : index
      %c0_11 = arith.constant 0 : index
      %35 = vector.load %arg6[%c0_10, %c0_11] : memref<8x128xf32, #tpu.memory_space<vmem>>, vector<8x128xf32>
      %36 = vector.shape_cast %32 : vector<8x128xf32> to vector<1x8x128xf32>
      %cst_12 = arith.constant dense<0.000000e+00> : vector<8x128xf32>
      %37 = vector.multi_reduction <add>, %36, %cst_12 [0] : vector<1x8x128xf32> to vector<8x128xf32>
      %38 = arith.addf %35, %37 : vector<8x128xf32>
      %c0_13 = arith.constant 0 : index
      %c0_14 = arith.constant 0 : index
      %39 = vector.load %arg6[%c0_13, %c0_14] : memref<8x128xf32, #tpu.memory_space<vmem>>, vector<8x128xf32>
      tpu.vector_store %arg6[%c0_13, %c0_14], %38 {strides = array<i32>} : memref<8x128xf32, #tpu.memory_space<vmem>>, vector<8x128xf32>,
      %c0_15 = arith.constant 0 : index
      %c0_16 = arith.constant 0 : index
      %40 = vector.load %arg7[%c0_15, %c0_16] : memref<8x128xf32, #tpu.memory_space<vmem>>, vector<8x128xf32>
      %41 = vector.shape_cast %34 : vector<8x128xf32> to vector<1x8x128xf32>
      %cst_17 = arith.constant dense<0.000000e+00> : vector<8x128xf32>
      %42 = vector.multi_reduction <add>, %41, %cst_17 [0] : vector<1x8x128xf32> to vector<8x128xf32>
      %43 = arith.addf %40, %42 : vector<8x128xf32>
      %c0_18 = arith.constant 0 : index
      %c0_19 = arith.constant 0 : index
      %44 = vector.load %arg7[%c0_18, %c0_19] : memref<8x128xf32, #tpu.memory_space<vmem>>, vector<8x128xf32>
      tpu.vector_store %arg7[%c0_18, %c0_19], %43 {strides = array<i32>} : memref<8x128xf32, #tpu.memory_space<vmem>>, vector<8x128xf32>,
    } else {
    }
    %c1_i32 = arith.constant 1 : i32
    %22 = arith.cmpi eq, %arg1, %c1_i32 : i32
    %23 = arith.extui %22 : i1 to i32
    %c0_i32_8 = arith.constant 0 : i32
    %24 = arith.cmpi ne, %23, %c0_i32_8 : i32
    scf.if %24 {
      %c0_9 = arith.constant 0 : index
      %c0_10 = arith.constant 0 : index
      %25 = vector.load %arg6[%c0_9, %c0_10] : memref<8x128xf32, #tpu.memory_space<vmem>>, vector<8x128xf32>
      %26 = vector.shape_cast %25 : vector<8x128xf32> to vector<1x8x128xf32>
      %cst = arith.constant dense<0.000000e+00> : vector<1xf32>
      %27 = vector.multi_reduction <add>, %26, %cst [1, 2] : vector<1x8x128xf32> to vector<1xf32>
      %28 = vector.shape_cast %27 : vector<1xf32> to vector<1x1x1xf32>
      %29 = vector.extract %28[0, 0, 0] : f32 from vector<1x1x1xf32>
      %30 = vector.broadcast %29 : f32 to vector<1x8x128xf32>
      %c0_11 = arith.constant 0 : index
      %c0_12 = arith.constant 0 : index
      %c0_13 = arith.constant 0 : index
      %31 = vector.load %arg4[%c0_11, %c0_12, %c0_13] : memref<1x8x128xf32, #tpu.memory_space<vmem>>, vector<1x8x128xf32>
      tpu.vector_store %arg4[%c0_11, %c0_12, %c0_13], %30 {strides = array<i32>} : memref<1x8x128xf32, #tpu.memory_space<vmem>>, vector<1x8x128xf32>,
      %c0_14 = arith.constant 0 : index
      %c0_15 = arith.constant 0 : index
      %32 = vector.load %arg7[%c0_14, %c0_15] : memref<8x128xf32, #tpu.memory_space<vmem>>, vector<8x128xf32>
      %33 = vector.shape_cast %32 : vector<8x128xf32> to vector<1x8x128xf32>
      %cst_16 = arith.constant dense<0.000000e+00> : vector<1xf32>
      %34 = vector.multi_reduction <add>, %33, %cst_16 [1, 2] : vector<1x8x128xf32> to vector<1xf32>
      %35 = vector.shape_cast %34 : vector<1xf32> to vector<1x1x1xf32>
      %36 = vector.extract %35[0, 0, 0] : f32 from vector<1x1x1xf32>
      %37 = vector.broadcast %36 : f32 to vector<1x8x128xf32>
      %c0_17 = arith.constant 0 : index
      %c0_18 = arith.constant 0 : index
      %c0_19 = arith.constant 0 : index
      %38 = vector.load %arg5[%c0_17, %c0_18, %c0_19] : memref<1x8x128xf32, #tpu.memory_space<vmem>>, vector<1x8x128xf32>
      tpu.vector_store %arg5[%c0_17, %c0_18, %c0_19], %37 {strides = array<i32>} : memref<1x8x128xf32, #tpu.memory_space<vmem>>, vector<1x8x128xf32>,
    } else {
    }
    return
  }
  func.func @transform_0(%arg0: i32, %arg1: i32) -> (i32, i32) {
    %c2_i32 = arith.constant 2 : i32
    %0 = arith.muli %arg0, %c2_i32 : i32
    %1 = arith.addi %0, %arg1 : i32
    %c2_i32_0 = arith.constant 2 : i32
    %2 = arith.minsi %1, %c2_i32_0 : i32
    %c0_i32 = arith.constant 0 : i32
    %c0_i32_1 = arith.constant 0 : i32
    return %2, %c0_i32 : i32, i32
  }
  func.func @transform_1(%arg0: i32, %arg1: i32) -> (i32, i32) {
    %c2_i32 = arith.constant 2 : i32
    %0 = arith.muli %arg0, %c2_i32 : i32
    %1 = arith.addi %0, %arg1 : i32
    %c2_i32_0 = arith.constant 2 : i32
    %2 = arith.minsi %1, %c2_i32_0 : i32
    %c0_i32 = arith.constant 0 : i32
    %c0_i32_1 = arith.constant 0 : i32
    return %2, %c0_i32 : i32, i32
  }
  func.func @transform_2(%arg0: i32, %arg1: i32) -> (i32, i32, i32) {
    %c0_i32 = arith.constant 0 : i32
    %c0_i32_0 = arith.constant 0 : i32
    %c0_i32_1 = arith.constant 0 : i32
    return %arg0, %c0_i32, %c0_i32_0 : i32, i32, i32
  }
  func.func @transform_3(%arg0: i32, %arg1: i32) -> (i32, i32, i32) {
    %c0_i32 = arith.constant 0 : i32
    %c0_i32_0 = arith.constant 0 : i32
    %c0_i32_1 = arith.constant 0 : i32
    return %arg0, %c0_i32, %c0_i32_0 : i32, i32, i32
  }
}

</mosaic_0001>

<llo_original>
// kernel: tpu_custom_call.1
$region0: #{tpu_custom_call.1}
  #allocation0 [shape = 'u32[]', space=smem, size = 0x4, offset = 0x4, fixed_abs, tag = 'smem constant byte address 0x4 - core index']
  #allocation1 [shape = 'u32[144,128]{1,0:T(1,128)}', space=vmem, size = 0x12000, scoped, tag = 'internal scratch']
  #allocation2 [shape = 'f32[8,128]{1,0:T(8,128)}', space=vmem, size = 0x1000, scoped, tag = 'scratch operand']
  #allocation3 [shape = 'f32[8,128]{1,0:T(8,128)}', space=vmem, size = 0x1000, scoped, tag = 'scratch operand']
  %s0 = inlined_call_operand.hbm [shape: f32[21,128], index: 0, kind: input, shape index: {}]
  %s1 = inlined_call_operand.hbm [shape: f32[21,128], index: 1, kind: input, shape index: {}]
  %s2 = inlined_call_operand.hbm [shape: f32[2,8,128], index: 2, kind: output, shape index: {0}]
  %s3 = inlined_call_operand.hbm [shape: f32[2,8,128], index: 3, kind: output, shape index: {1}]
  %4 = xla_tuple %s2, %s3
  %s5 = sld [smem:[#allocation0]]
  $region73: #{tpu_custom_call.1} parent=0
    _
  %s7 = ssub.s32 1, %s5
  %s8 = scalar_select 0, %s7, %s5
  $region1: #{tpu_custom_call.1} parent=0
    #allocation4 [shape = 'u8[8192]{0}', space=vmem, size = 0x2000, scoped, tag = 'input window, operand 0']
    #allocation5 [shape = 's32[2]{0}', space=sflag, size = 0x8, scoped, tag = 'scoped memory for tpu_custom_call.1']
    #allocation6 [shape = 's32[2]{0}', space=sflag, size = 0x8, scoped, tag = 'scoped memory for tpu_custom_call.1']
    #allocation7 [shape = 'u8[8192]{0}', space=vmem, size = 0x2000, scoped, tag = 'input window, operand 1']
    #allocation8 [shape = 's32[2]{0}', space=sflag, size = 0x8, scoped, tag = 'scoped memory for tpu_custom_call.1']
    #allocation9 [shape = 'u8[8192]{0}', space=vmem, size = 0x2000, scoped, tag = 'output window, operand 0']
    #allocation10 [shape = 'u8[8192]{0}', space=vmem, size = 0x2000, scoped, tag = 'output window, operand 1']
    #allocation11 [shape = 's32[2]{0}', space=sflag, size = 0x8, scoped, tag = 'scoped memory for tpu_custom_call.1']
    %9 = vsyncpa [#allocation5], 0
    %s10 = scalar_lea.sflag [#allocation5], 1
    %11 = vsyncpa %s10, 0
    %12 = vsyncpa [#allocation8], 0
    %s13 = scalar_lea.sflag [#allocation8], 1
    %14 = vsyncpa %s13, 0
    %15 = vsyncpa [#allocation6], 0
    %s16 = scalar_lea.sflag [#allocation6], 1
    %17 = vsyncpa %s16, 0
    %18 = vsyncpa [#allocation11], 0
    %s19 = scalar_lea.sflag [#allocation11], 1
    %20 = vsyncpa %s19, 0
    loop: start=0, step=1, limit=6
    $region2: #{tpu_custom_call.1} parent=1 // loop_pre_header
      _
    $region3: #{tpu_custom_call.1} parent=1 // loop_header
      %s22 = sphi 0, %s26
      %p23 = scmp.ge.s32.totalorder %s22, 6
      %s29 = sphi 0, %s41
      %s30 = sphi 0, %s37
      %s31 = sphi 0, %s29
      %s32 = sphi 0, %s30
      %s33 = sphi 0, %s31
      %s34 = sphi 0, %s32
      %s52 = sphi 0, %s54
      %s55 = sphi 0, %s52
      %s56 = sphi 0, %s55
      %s72 = sphi 0, %s56
      %s86 = sphi 0, %s88
      %s89 = sphi 0, %s86
      %s90 = sphi 0, %s89
      %s106 = sphi 0, %s90
      %s112 = sphi 0, %s114
      %s115 = sphi 0, %s112
      %s116 = sphi 0, %s115
      %s132 = sphi 0, %s116
      %s138 = sphi 0, %s140
      %s141 = sphi 0, %s138
      %s142 = sphi 0, %s141
      %s158 = sphi 0, %s142
    $region4: #{tpu_custom_call.1} parent=1 // loop_header_branch
      %25 = sbr.rel (%p23) target = $region8
    $region5: #{tpu_custom_call.1} parent=1 // loop_body
      %s27 = ssub.s32 %s22, 1
      %s28 = ssub.s32 %s22, 2
      %s35 = sadd.s32 1, %s30
      %p36 = scmp.ge.s32.totalorder %s35, 2
      %s37 = scalar_select %p36, 0, %s35
      %s38 = sadd.s32 1, %s29
      %s39 = scalar_select %p36, %s38, %s29
      %p40 = scmp.ge.s32.totalorder %s39, 2
      %s41 = scalar_select %p40, 0, %s39
      %s42 = smul.u32 %s29, 2
      %s43 = sadd.s32 %s42, %s30
      %p44 = scmp.lt.s32.totalorder %s43, 2
      %s45 = scalar_select %p44, %s43, 2
      %s46 = smul.u32 %s41, 2
      %s47 = sadd.s32 %s46, %s37
      %p48 = scmp.lt.s32.totalorder %s47, 2
      %s49 = scalar_select %p48, %s47, 2
      %s50 = ssub.s32 %s45, %s49
      %p51 = scmp.eq.s32.totalorder %s50, 0
      %s53 = sadd.s32 %s52, 1
      %s54 = scalar_select %p51, %s52, %s53
      %p57 = pneg %p51
      %p58 = scmp.eq.s32.totalorder %s22, 3
      %p59 = por %p57, %p58
      %p60 = scmp.ne.s32.totalorder %s52, %s55
      %p61 = scmp.eq.s32.totalorder %s22, 0
      %p62 = por %p60, %p61
      %p63 = scmp.ne.s32.totalorder %s52, %s55
      %p64 = scmp.eq.s32.totalorder %s27, 3
      %p65 = por %p63, %p64
      %p66 = scmp.ne.s32.totalorder %s55, %s56
      %p67 = scmp.eq.s32.totalorder %s27, 0
      %p68 = por %p66, %p67
      %p69 = scmp.ne.s32.totalorder %s55, %s56
      %p70 = scmp.eq.s32.totalorder %s28, 3
      %p71 = por %p69, %p70
      %p73 = scmp.ne.s32.totalorder %s56, %s72
      %p74 = scmp.eq.s32.totalorder %s28, 0
      %p75 = por %p73, %p74
      %s76 = smul.u32 %s29, 2
      %s77 = sadd.s32 %s76, %s30
      %p78 = scmp.lt.s32.totalorder %s77, 2
      %s79 = scalar_select %p78, %s77, 2
      %s80 = smul.u32 %s41, 2
      %s81 = sadd.s32 %s80, %s37
      %p82 = scmp.lt.s32.totalorder %s81, 2
      %s83 = scalar_select %p82, %s81, 2
      %s84 = ssub.s32 %s79, %s83
      %p85 = scmp.eq.s32.totalorder %s84, 0
      %s87 = sadd.s32 %s86, 1
      %s88 = scalar_select %p85, %s86, %s87
      %p91 = pneg %p85
      %p92 = scmp.eq.s32.totalorder %s22, 3
      %p93 = por %p91, %p92
      %p94 = scmp.ne.s32.totalorder %s86, %s89
      %p95 = scmp.eq.s32.totalorder %s22, 0
      %p96 = por %p94, %p95
      %p97 = scmp.ne.s32.totalorder %s86, %s89
      %p98 = scmp.eq.s32.totalorder %s27, 3
      %p99 = por %p97, %p98
      %p100 = scmp.ne.s32.totalorder %s89, %s90
      %p101 = scmp.eq.s32.totalorder %s27, 0
      %p102 = por %p100, %p101
      %p103 = scmp.ne.s32.totalorder %s89, %s90
      %p104 = scmp.eq.s32.totalorder %s28, 3
      %p105 = por %p103, %p104
      %p107 = scmp.ne.s32.totalorder %s90, %s106
      %p108 = scmp.eq.s32.totalorder %s28, 0
      %p109 = por %p107, %p108
      %s110 = ssub.s32 %s29, %s41
      %p111 = scmp.eq.s32.totalorder %s110, 0
      %s113 = sadd.s32 %s112, 1
      %s114 = scalar_select %p111, %s112, %s113
      %p117 = pneg %p111
      %p118 = scmp.eq.s32.totalorder %s22, 3
      %p119 = por %p117, %p118
      %p120 = scmp.ne.s32.totalorder %s112, %s115
      %p121 = scmp.eq.s32.totalorder %s22, 0
      %p122 = por %p120, %p121
      %p123 = scmp.ne.s32.totalorder %s112, %s115
      %p124 = scmp.eq.s32.totalorder %s27, 3
      %p125 = por %p123, %p124
      %p126 = scmp.ne.s32.totalorder %s115, %s116
      %p127 = scmp.eq.s32.totalorder %s27, 0
      %p128 = por %p126, %p127
      %p129 = scmp.ne.s32.totalorder %s115, %s116
      %p130 = scmp.eq.s32.totalorder %s28, 3
      %p131 = por %p129, %p130
      %p133 = scmp.ne.s32.totalorder %s116, %s132
      %p134 = scmp.eq.s32.totalorder %s28, 0
      %p135 = por %p133, %p134
      %s136 = ssub.s32 %s29, %s41
      %p137 = scmp.eq.s32.totalorder %s136, 0
      %s139 = sadd.s32 %s138, 1
      %s140 = scalar_select %p137, %s138, %s139
      %p143 = pneg %p137
      %p144 = scmp.eq.s32.totalorder %s22, 3
      %p145 = por %p143, %p144
      %p146 = scmp.ne.s32.totalorder %s138, %s141
      %p147 = scmp.eq.s32.totalorder %s22, 0
      %p148 = por %p146, %p147
      %p149 = scmp.ne.s32.totalorder %s138, %s141
      %p150 = scmp.eq.s32.totalorder %s27, 3
      %p151 = por %p149, %p150
      %p152 = scmp.ne.s32.totalorder %s141, %s142
      %p153 = scmp.eq.s32.totalorder %s27, 0
      %p154 = por %p152, %p153
      %p155 = scmp.ne.s32.totalorder %s141, %s142
      %p156 = scmp.eq.s32.totalorder %s28, 3
      %p157 = por %p155, %p156
      %p159 = scmp.ne.s32.totalorder %s142, %s158
      %p160 = scmp.eq.s32.totalorder %s28, 0
      %p161 = por %p159, %p160
      %p162 = scmp.le.s32.totalorder 1, %s22
      %p163 = scmp.lt.s32.totalorder %s22, 5
      %p164 = pnand %p162, %p163
      %p165 = pneg %p164
      // Predicated region
      $region9: #{tpu_custom_call.1} parent=5 // pred_check
        _
      $region10: #{tpu_custom_call.1} parent=5 // pred_check_branch
        %167 = sbr.rel (%p164) target = $region12
      $region11: #{tpu_custom_call.1} parent=5 // pred_region
        %s168 = ssub.s32 %s22, 1
      $region12: #{tpu_custom_call.1} parent=5 // pred_fallthru
        _
      %p169 = scmp.lt.s32.totalorder %s22, 4
      // Predicated region
      $region13: #{tpu_custom_call.1} parent=5 // pred_check
        %p170 = pneg %p169
      $region14: #{tpu_custom_call.1} parent=5 // pred_check_branch
        %172 = sbr.rel (%p170) target = $region16
      $region15: #{tpu_custom_call.1} parent=5 // pred_region
        // Predicated region
        $region17: #{tpu_custom_call.1} parent=15 // pred_check
          %p173 = pneg %p62
        $region18: #{tpu_custom_call.1} parent=15 // pred_check_branch
          %175 = sbr.rel (%p173) target = $region20
        $region19: #{tpu_custom_call.1} parent=15 // pred_region
          %s176 = sand.u32 %s52, 1
          %s177 = scalar_lea.sflag [#allocation5], %s176
          %s178 = sand.u32 %s52, 1
          %s179 = smul.addr %s178, 8
          %s180 = scalar_lea.vmem [#allocation4], %s179
          %s181 = smul.u32 %s29, 2
          %s182 = sadd.s32 %s181, %s30
          %p183 = scmp.lt.s32.totalorder %s182, 2
          %s184 = scalar_select %p183, %s182, 2
          %s186 = ssub.s32 128, 128
          %187 = vsyncadd %s177, %s186
          %s188 = smul.addr %s184, 128
          %s189 = scalar_lea.hbm %s0, %s188
          %s191 = sshll.u32 %s180, 4
          %s192 = int_to_ptr.vmem [resolvable:$true] %s191
          %194 = dma.hbm_to_vmem [thread:$0]  %s189, 128, %s192, %s177
        $region20: #{tpu_custom_call.1} parent=15 // pred_fallthru
          _
        // Predicated region
        $region21: #{tpu_custom_call.1} parent=15 // pred_check
          %p195 = pneg %p96
        $region22: #{tpu_custom_call.1} parent=15 // pred_check_branch
          %197 = sbr.rel (%p195) target = $region24
        $region23: #{tpu_custom_call.1} parent=15 // pred_region
          %s198 = sand.u32 %s86, 1
          %s199 = scalar_lea.sflag [#allocation8], %s198
          %s200 = sand.u32 %s86, 1
          %s201 = smul.addr %s200, 8
          %s202 = scalar_lea.vmem [#allocation7], %s201
          %s203 = smul.u32 %s29, 2
          %s204 = sadd.s32 %s203, %s30
          %p205 = scmp.lt.s32.totalorder %s204, 2
          %s206 = scalar_select %p205, %s204, 2
          %s208 = ssub.s32 128, 128
          %209 = vsyncadd %s199, %s208
          %s210 = smul.addr %s206, 128
          %s211 = scalar_lea.hbm %s1, %s210
          %s213 = sshll.u32 %s202, 4
          %s214 = int_to_ptr.vmem [resolvable:$true] %s213
          %216 = dma.hbm_to_vmem [thread:$0]  %s211, 128, %s214, %s199
        $region24: #{tpu_custom_call.1} parent=15 // pred_fallthru
          _
      $region16: #{tpu_custom_call.1} parent=5 // pred_fallthru
        _
      %p217 = scmp.le.s32.totalorder 1, %s22
      %p218 = scmp.lt.s32.totalorder %s22, 5
      %p219 = pnand %p217, %p218
      %p220 = pneg %p219
      // Predicated region
      $region25: #{tpu_custom_call.1} parent=5 // pred_check
        _
      $region26: #{tpu_custom_call.1} parent=5 // pred_check_branch
        %222 = sbr.rel (%p219) target = $region28
      $region27: #{tpu_custom_call.1} parent=5 // pred_region
        %s223 = ssub.s32 %s22, 1
        %s224 = sand.u32 %s55, 1
        %s225 = scalar_lea.sflag [#allocation5], %s224
        %s226 = sand.u32 %s55, 1
        %s227 = smul.addr %s226, 8
        %s228 = scalar_lea.vmem [#allocation4], %s227
        // Predicated region
        $region29: #{tpu_custom_call.1} parent=27 // pred_check
          %p229 = pneg %p68
        $region30: #{tpu_custom_call.1} parent=27 // pred_check_branch
          %231 = sbr.rel (%p229) target = $region32
        $region31: #{tpu_custom_call.1} parent=27 // pred_region
          %232 = dma.done %s225, 128
        $region32: #{tpu_custom_call.1} parent=27 // pred_fallthru
          _
        %s233 = sand.u32 %s89, 1
        %s234 = scalar_lea.sflag [#allocation8], %s233
        %s235 = sand.u32 %s89, 1
        %s236 = smul.addr %s235, 8
        %s237 = scalar_lea.vmem [#allocation7], %s236
        // Predicated region
        $region33: #{tpu_custom_call.1} parent=27 // pred_check
          %p238 = pneg %p102
        $region34: #{tpu_custom_call.1} parent=27 // pred_check_branch
          %240 = sbr.rel (%p238) target = $region36
        $region35: #{tpu_custom_call.1} parent=27 // pred_region
          %241 = dma.done %s234, 128
        $region36: #{tpu_custom_call.1} parent=27 // pred_fallthru
          _
        %s242 = sand.u32 %s55, 1
        %s243 = scalar_lea.sflag [#allocation5], %s242
        %s244 = sand.u32 %s55, 1
        %s245 = smul.addr %s244, 8
        %s246 = scalar_lea.vmem [#allocation4], %s245
        %p247 = pneg %p68
        %p248 = pneg %p65
        %s249 = sand.u32 %s89, 1
        %s250 = scalar_lea.sflag [#allocation8], %s249
        %s251 = sand.u32 %s89, 1
        %s252 = smul.addr %s251, 8
        %s253 = scalar_lea.vmem [#allocation7], %s252
        %p254 = pneg %p102
        %p255 = pneg %p99
        %p256 = pneg %p128
        %p257 = pneg %p125
        %s258 = sand.u32 %s115, 1
        %s259 = scalar_lea.sflag [#allocation6], %s258
        %s260 = sand.u32 %s115, 1
        %s261 = smul.addr %s260, 8
        %s262 = scalar_lea.vmem [#allocation9], %s261
        %p263 = pneg %p154
        %p264 = pneg %p151
        %s265 = sand.u32 %s141, 1
        %s266 = scalar_lea.sflag [#allocation11], %s265
        %s267 = sand.u32 %s141, 1
        %s268 = smul.addr %s267, 8
        %s269 = scalar_lea.vmem [#allocation10], %s268
        %s270 = smul.u32 %s31, 2
        %s271 = sadd.s32 %s270, %s32
        %p272 = scmp.lt.s32.totalorder %s271, 2
        %s273 = scalar_select %p272, %s271, 2
        %s274 = smul.u32 %s31, 2
        %s275 = sadd.s32 %s274, %s32
        %p276 = scmp.lt.s32.totalorder %s275, 2
        %s277 = scalar_select %p276, %s275, 2
        %p278 = scmp.eq.s32.totalorder %s32, 0
        // Predicated region
        $region37: #{tpu_custom_call.1} parent=27 // pred_check
          %p279 = pneg %p278
        $region38: #{tpu_custom_call.1} parent=27 // pred_check_branch
          %281 = sbr.rel (%p279) target = $region40
        $region39: #{tpu_custom_call.1} parent=27 // pred_region
          %282 = vst [vmem:[#allocation2] sm:$0xff] 0.0
          %283 = vst [vmem:[#allocation3] sm:$0xff] 0.0
        $region40: #{tpu_custom_call.1} parent=27 // pred_fallthru
          _
        %v284 = vld [vmem:[%s228] sm:$0xff]
        %v285 = vld [vmem:[%s237] sm:$0xff]
        %v286 = vand.u32 2147483647, %v284
        %v287 = vand.u32 2147483647, %v285
        %v288 = vadd.f32 %v286, %v287
        %v289 = vsub.f32 %v284, %v285
        %v290 = vand.u32 2147483647, %v289
        %s291 = smul.u32 %s31, 2
        %s292 = sadd.s32 %s291, %s32
        %p293 = scmp.lt.s32.totalorder %s292, 2
        %s294 = scalar_select %p293, %s292, 2
        %p295 = scmp.lt.s32.totalorder %s292, 3
        %p296 = scmp.eq.s32.totalorder %s294, 2
        %p297 = scmp.ne.s32.totalorder %s294, 2
        %p298 = pnand %p295, %p297
        %p299 = pneg %p298
        %p300 = pnand %p295, %p296
        %p301 = pneg %p300
        // Predicated region
        $region41: #{tpu_custom_call.1} parent=27 // pred_check
          _
        $region42: #{tpu_custom_call.1} parent=27 // pred_check_branch
          %303 = sbr.rel (%p298) target = $region44
        $region43: #{tpu_custom_call.1} parent=27 // pred_region
          %v304 = vld [vmem:[#allocation2] sm:$0xff]
          %v305 = vadd.f32 %v288, 0.0
          %v306 = vadd.f32 %v304, %v305
          %307 = vst [vmem:[#allocation2] sm:$0xff] %v306
          %v308 = vld [vmem:[#allocation3] sm:$0xff]
          %v309 = vadd.f32 %v290, 0.0
          %v310 = vadd.f32 %v308, %v309
          %311 = vst [vmem:[#allocation3] sm:$0xff] %v310
        $region44: #{tpu_custom_call.1} parent=27 // pred_fallthru
          _
        // Predicated region
        $region45: #{tpu_custom_call.1} parent=27 // pred_check
          _
        $region46: #{tpu_custom_call.1} parent=27 // pred_check_branch
          %313 = sbr.rel (%p300) target = $region48
        $region47: #{tpu_custom_call.1} parent=27 // pred_region
          %s314 = smul.u32 %s294, 8
          %v315 = vlaneseq
          %v316 = vshrl.u32 %v315, 7
          %v317 = vstv %s314
          %v318 = vadd.s32 %v317, %v316
          %vm319 = vcmp.lt.s32.totalorder %v318, 21
          %v320 = vsel %vm319, %v288, 0.0
          %v321 = vsel %vm319, %v290, 0.0
          %v322 = vld [vmem:[#allocation2] sm:$0xff]
          %v323 = vadd.f32 %v320, 0.0
          %v324 = vadd.f32 %v322, %v323
          %325 = vst [vmem:[#allocation2] sm:$0xff] %v324
          %v326 = vld [vmem:[#allocation3] sm:$0xff]
          %v327 = vadd.f32 %v321, 0.0
          %v328 = vadd.f32 %v326, %v327
          %329 = vst [vmem:[#allocation3] sm:$0xff] %v328
        $region48: #{tpu_custom_call.1} parent=27 // pred_fallthru
          _
        %p330 = scmp.eq.s32.totalorder %s32, 1
        // Predicated region
        $region49: #{tpu_custom_call.1} parent=27 // pred_check
          %p331 = pneg %p330
        $region50: #{tpu_custom_call.1} parent=27 // pred_check_branch
          %333 = sbr.rel (%p331) target = $region52
        $region51: #{tpu_custom_call.1} parent=27 // pred_region
          %v334 = vld [vmem:[#allocation2] sm:$0xff]
          %335 = vadd.xlane.f32.xlu0 %v334
          %v336 = vpop.xlane.xlu0 %335
          %v337 = vrot.slane %v336, 4
          %v338 = vadd.f32 %v336, %v337
          %v339 = vrot.slane %v338, 2
          %v340 = vadd.f32 %v338, %v339
          %v341 = vrot.slane %v340, 1
          %v342 = vadd.f32 %v340, %v341
          %s343 = vtos %v342
          %v344 = vstv %s343
          %345 = vst [vmem:[%s262] sm:$0xff] %v344
          %v346 = vld [vmem:[#allocation3] sm:$0xff]
          %347 = vadd.xlane.f32.xlu0 %v346
          %v348 = vpop.xlane.xlu0 %347
          %v349 = vrot.slane %v348, 4
          %v350 = vadd.f32 %v348, %v349
          %v351 = vrot.slane %v350, 2
          %v352 = vadd.f32 %v350, %v351
          %v353 = vrot.slane %v352, 1
          %v354 = vadd.f32 %v352, %v353
          %s355 = vtos %v354
          %v356 = vstv %s355
          %357 = vst [vmem:[%s269] sm:$0xff] %v356
        $region52: #{tpu_custom_call.1} parent=27 // pred_fallthru
          _
        %s358 = sand.u32 %s115, 1
        %s359 = scalar_lea.sflag [#allocation6], %s358
        %s360 = sand.u32 %s115, 1
        %s361 = smul.addr %s360, 8
        %s362 = scalar_lea.vmem [#allocation9], %s361
        %s363 = sand.u32 %s141, 1
        %s364 = scalar_lea.sflag [#allocation11], %s363
        %s365 = sand.u32 %s141, 1
        %s366 = smul.addr %s365, 8
        %s367 = scalar_lea.vmem [#allocation10], %s366
        // Predicated region
        $region53: #{tpu_custom_call.1} parent=27 // pred_check
          %p368 = pneg %p125
        $region54: #{tpu_custom_call.1} parent=27 // pred_check_branch
          %370 = sbr.rel (%p368) target = $region56
        $region55: #{tpu_custom_call.1} parent=27 // pred_region
          %s372 = ssub.s32 128, 128
          %373 = vsyncadd %s359, %s372
          %s374 = smul.addr %s31, 128
          %s375 = scalar_lea.hbm %s2, %s374
          %s377 = sshll.u32 %s362, 4
          %s378 = int_to_ptr.vmem [resolvable:$true] %s377
          %380 = dma.vmem_to_hbm [thread:$0]  %s378, 128, %s375, %s359
        $region56: #{tpu_custom_call.1} parent=27 // pred_fallthru
          _
        // Predicated region
        $region57: #{tpu_custom_call.1} parent=27 // pred_check
          %p381 = pneg %p151
        $region58: #{tpu_custom_call.1} parent=27 // pred_check_branch
          %383 = sbr.rel (%p381) target = $region60
        $region59: #{tpu_custom_call.1} parent=27 // pred_region
          %s385 = ssub.s32 128, 128
          %386 = vsyncadd %s364, %s385
          %s387 = smul.addr %s31, 128
          %s388 = scalar_lea.hbm %s3, %s387
          %s390 = sshll.u32 %s367, 4
          %s391 = int_to_ptr.vmem [resolvable:$true] %s390
          %393 = dma.vmem_to_hbm [thread:$0]  %s391, 128, %s388, %s364
        $region60: #{tpu_custom_call.1} parent=27 // pred_fallthru
          _
      $region28: #{tpu_custom_call.1} parent=5 // pred_fallthru
        _
      %p394 = scmp.le.s32.totalorder 2, %s22
      // Predicated region
      $region61: #{tpu_custom_call.1} parent=5 // pred_check
        %p395 = pneg %p394
      $region62: #{tpu_custom_call.1} parent=5 // pred_check_branch
        %397 = sbr.rel (%p395) target = $region64
      $region63: #{tpu_custom_call.1} parent=5 // pred_region
        %s398 = ssub.s32 %s22, 2
        // Predicated region
        $region65: #{tpu_custom_call.1} parent=63 // pred_check
          %p399 = pneg %p131
        $region66: #{tpu_custom_call.1} parent=63 // pred_check_branch
          %401 = sbr.rel (%p399) target = $region68
        $region67: #{tpu_custom_call.1} parent=63 // pred_region
          %s402 = sand.u32 %s116, 1
          %s403 = scalar_lea.sflag [#allocation6], %s402
          %s404 = sand.u32 %s116, 1
          %s405 = smul.addr %s404, 8
          %s406 = scalar_lea.vmem [#allocation9], %s405
          %407 = dma.done %s403, 128
        $region68: #{tpu_custom_call.1} parent=63 // pred_fallthru
          _
        // Predicated region
        $region69: #{tpu_custom_call.1} parent=63 // pred_check
          %p408 = pneg %p157
        $region70: #{tpu_custom_call.1} parent=63 // pred_check_branch
          %410 = sbr.rel (%p408) target = $region72
        $region71: #{tpu_custom_call.1} parent=63 // pred_region
          %s411 = sand.u32 %s142, 1
          %s412 = scalar_lea.sflag [#allocation11], %s411
          %s413 = sand.u32 %s142, 1
          %s414 = smul.addr %s413, 8
          %s415 = scalar_lea.vmem [#allocation10], %s414
          %416 = dma.done %s412, 128
        $region72: #{tpu_custom_call.1} parent=63 // pred_fallthru
          _
      $region64: #{tpu_custom_call.1} parent=5 // pred_fallthru
        _
    $region6: #{tpu_custom_call.1} parent=1 // loop_footer
      %s26 = sadd.s32 1, %s22
    $region7: #{tpu_custom_call.1} parent=1 // loop_footer_branch
      %21 = sbr.rel target = $region3
    $region8: #{tpu_custom_call.1} parent=1 // loop_exit
      _
    %417 = vsyncpa [#allocation5], 1
    %s418 = scalar_lea.sflag [#allocation5], 1
    %419 = vsyncpa %s418, 1
    %420 = vsyncpa [#allocation8], 1
    %s421 = scalar_lea.sflag [#allocation8], 1
    %422 = vsyncpa %s421, 1
    %423 = vsyncpa [#allocation6], 1
    %s424 = scalar_lea.sflag [#allocation6], 1
    %425 = vsyncpa %s424, 1
    %426 = vsyncpa [#allocation11], 1
    %s427 = scalar_lea.sflag [#allocation11], 1
    %428 = vsyncpa %s427, 1

</llo_original>
